<compile_context>
chip_gen: v7x
topology: tpu7x:2x2x1
jax: 0.10.0
libtpu: 0.0.40
codegen_flags: <defaults>
</compile_context>

<pallas_src>
import jax
import jax.numpy as jnp
import numpy as np
from jax import lax
from jax.experimental import pallas as pl
from jax.experimental.pallas import tpu as pltpu

# Per-block VMEM budget and scoped-VMEM limit.  2 blocked operands x 2 pipeline
# buffers x 8 MiB = 32 MiB < 48 MiB, and 48 MiB fits v7x's 64 MiB physical VMEM
# as well as v5e/v6e's 128 MiB.
_BLOCK_BUDGET = 8 << 20
_VMEM_LIMIT = 48 << 20


# ---------------------------------------------------------------------------
# helpers
# ---------------------------------------------------------------------------
def _sublane_rows(dtype):
    """Minimum sublane tile (rows) for this dtype: 8 f32 / 16 bf16 / 32 int8."""
    return max(8, 32 // jnp.dtype(dtype).itemsize)


def _plan_blocks_2d(BH, rows, S, D, sub, itemsize, budget):
    """(bh_blk, l_blk) for the lane-dense flattened (BH, rows*D) copy, or None.

    Constraints: bh_blk % 8 == 0 or bh_blk == BH; (l_blk*D) % 128 == 0 (or the
    block equals the full arrays).  Prefer blocks that fit the VMEM budget, then
    >=2 total grid steps (megacore), then the largest block.
    """
    l_cands = [l for l in range(sub, rows + 1, sub)
               if rows % l == 0 and (l * D) % 128 == 0]
    if not l_cands and rows == S:
        l_cands = [rows]                      # full-array block is always legal
    if not l_cands:
        return None
    bh_cands = [b for b in range(1, BH + 1)
                if BH % b == 0 and (b % 8 == 0 or b == BH)]
    best = None
    for l in l_cands:
        for b in bh_cands:
            nbytes = b * l * D * itemsize
            steps = (BH // b) * (rows // l)
            key = (nbytes <= budget, steps >= 2,
                   nbytes if nbytes <= budget else -nbytes)
            if best is None or key > best[0]:
                best = (key, (b, l))
    return best[1]


def _plan_blocks_3d(BH, rows, S, D, sub, itemsize, budget):
    """(bh_blk, l_blk) for (bh, l, D) blocks.  Same preference order as above."""
    if rows % sub == 0:
        l_cands = [l for l in range(sub, rows + 1, sub) if rows % l == 0]
    else:
        l_cands = [rows]                      # only reached when rows == S (full seq)
    bh_cands = [b for b in range(1, BH + 1) if BH % b == 0]
    best = None
    for l in l_cands:
        for b in bh_cands:
            nbytes = b * l * D * itemsize
            steps = (BH // b) * (rows // l)
            key = (nbytes <= budget, steps >= 2,
                   nbytes if nbytes <= budget else -nbytes)
            if best is None or key > best[0]:
                best = (key, (b, l))
    return best[1]


# ---------------------------------------------------------------------------
# kernels
# ---------------------------------------------------------------------------
def _overwrite_kernel(cur_ref, cache_ref, out_ref):
    # Pure copy.  The cache operand is ANY-space and never read: it exists only
    # so input_output_aliases makes the output buffer the existing cache and the
    # untouched seq tail survives with zero extra DMA traffic.
    del cache_ref
    out_ref[...] = cur_ref[...]


def _make_tail_kernel(valid_rows):
    # One sublane-tile block read-modify-write: rows < valid_rows come from cur,
    # the rest keep the old cache values.
    def kernel(cur_ref, cache_ref, out_ref):
        row = lax.broadcasted_iota(jnp.int32, cache_ref.shape, 1)
        out_ref[...] = jnp.where(row < valid_rows, cur_ref[...], cache_ref[...])
    return kernel


def _decode_write_kernel(start_ref, cur_ref, cache_ref, out_ref, sem):
    # cache_ref/out_ref are the SAME aliased HBM buffer.  The old cache is never
    # read; the single new row (BH, 1, D) is written with one strided DMA.
    del cache_ref
    start = start_ref[0]
    cp = pltpu.make_async_copy(cur_ref, out_ref.at[:, pl.ds(start, 1), :], sem)
    cp.start()
    cp.wait()


# ---------------------------------------------------------------------------
# prefill path
# ---------------------------------------------------------------------------
def _bulk_overwrite(cache2, cur2, rows):
    """Copy cur2[:, :rows, :] into cache2[:, :rows, :] without reading the cache.

    `rows` must be a multiple of the dtype sublane tile, or equal to S.
    """
    BH, S, D = cache2.shape
    L = cur2.shape[1]
    dtype = cache2.dtype
    itemsize = jnp.dtype(dtype).itemsize
    sub = _sublane_rows(dtype)

    # Lane-dense 2D path: when D < 128 (or not a multiple of 128), flatten the
    # (seq, D) tail so output stores are full 128-lane vectors instead of masked
    # partial stores.  Free reshape (both arrays are contiguous).
    if D % 128 != 0:
        plan = _plan_blocks_2d(BH, rows, S, D, sub, itemsize, _BLOCK_BUDGET)
        if plan is not None:
            bh_blk, l_blk = plan
            lane_blk = l_blk * D
            cur_f = cur2.reshape(BH, L * D)
            cache_f = cache2.reshape(BH, S * D)
            out = pl.pallas_call(
                _overwrite_kernel,
                grid=(BH // bh_blk, rows // l_blk),
                in_specs=[
                    pl.BlockSpec((bh_blk, lane_blk), lambda i, j: (i, j)),  # cur
                    pl.BlockSpec(memory_space=pl.ANY),                      # cache (aliased, unread)
                ],
                out_specs=pl.BlockSpec((bh_blk, lane_blk), lambda i, j: (i, j)),
                out_shape=jax.ShapeDtypeStruct((BH, S * D), dtype),
                input_output_aliases={1: 0},
                compiler_params=pltpu.CompilerParams(
                    dimension_semantics=("parallel", "parallel"),
                    vmem_limit_bytes=_VMEM_LIMIT,
                ),
            )(cur_f, cache_f)
            return out.reshape(BH, S, D)

    # 3D path: D already lane-dense (multiple of 128) or no legal 2D plan.
    bh_blk, l_blk = _plan_blocks_3d(BH, rows, S, D, sub, itemsize, _BLOCK_BUDGET)
    blk = (bh_blk, l_blk, D)
    out = pl.pallas_call(
        _overwrite_kernel,
        grid=(BH // bh_blk, rows // l_blk),
        in_specs=[
            pl.BlockSpec(blk, lambda i, j: (i, j, 0)),   # cur
            pl.BlockSpec(memory_space=pl.ANY),           # cache (aliased, unread)
        ],
        out_specs=pl.BlockSpec(blk, lambda i, j: (i, j, 0)),
        out_shape=jax.ShapeDtypeStruct((BH, S, D), dtype),
        input_output_aliases={1: 0},
        compiler_params=pltpu.CompilerParams(
            dimension_semantics=("parallel", "parallel"),
            vmem_limit_bytes=_VMEM_LIMIT,
        ),
    )(cur2, cache2)
    return out


def _tail_rmw(cache2, cur_tail, seq_off):
    """Masked RMW of the single sublane-tile block holding the unaligned tail rows."""
    BH, S, D = cache2.shape
    r = cur_tail.shape[1]
    dtype = cache2.dtype
    itemsize = jnp.dtype(dtype).itemsize
    sub = _sublane_rows(dtype)
    assert 0 < r < sub and seq_off % sub == 0
    # Tiny pad (fewer than `sub` rows) so the block shapes line up.
    cur_pad = jnp.pad(cur_tail.astype(dtype), ((0, 0), (0, sub - r), (0, 0)))
    bh_blk, _ = _plan_blocks_3d(BH, sub, S, D, sub, itemsize, _BLOCK_BUDGET)
    blk = (bh_blk, sub, D)
    sblk = seq_off // sub
    out = pl.pallas_call(
        _make_tail_kernel(r),
        grid=(BH // bh_blk,),
        in_specs=[
            pl.BlockSpec(blk, lambda i: (i, 0, 0)),      # padded tail rows of cur
            pl.BlockSpec(blk, lambda i: (i, sblk, 0)),   # the one touched cache block
        ],
        out_specs=pl.BlockSpec(blk, lambda i: (i, sblk, 0)),
        out_shape=jax.ShapeDtypeStruct((BH, S, D), dtype),
        input_output_aliases={1: 0},
        compiler_params=pltpu.CompilerParams(
            dimension_semantics=("parallel",),
            vmem_limit_bytes=_VMEM_LIMIT,
        ),
    )(cur_pad, cache2)
    return out


def kv_cache_write_prefill(cache, cur):
    """Write cur (B,H,L,D) into cache (B,H,S,D) at seq offset 0. Returns new cache."""
    B, H, S, D = cache.shape
    Bc, Hc, L, Dc = cur.shape
    assert (Bc, Hc, Dc) == (B, H, D) and 0 < L <= S, (
        f"incompatible shapes {cache.shape} vs {cur.shape}"
    )
    cur = cur.astype(cache.dtype)
    BH = B * H
    sub = _sublane_rows(cache.dtype)
    cache2 = cache.reshape(BH, S, D)
    cur2 = cur.reshape(BH, L, D)

    if L % sub == 0 or L == S:
        out2 = _bulk_overwrite(cache2, cur2, L)
    else:
        # Split: aligned bulk copy (no cache reads, no cur padding/copy) + one
        # tiny masked tail block.
        La = (L // sub) * sub
        out2 = cache2
        if La > 0:
            out2 = _bulk_overwrite(out2, cur2, La)
        out2 = _tail_rmw(out2, cur2[:, La:, :], La)
    return out2.reshape(B, H, S, D)


# ---------------------------------------------------------------------------
# decode path
# ---------------------------------------------------------------------------
def kv_cache_write_token(cache, cur, start_idx):
    """Write cur (B,H,1,D) into cache (B,H,S,D) at dynamic seq row start_idx."""
    B, H, S, D = cache.shape
    assert cur.shape == (B, H, 1, D), f"decode write expects L=1, got {cur.shape}"
    cur = cur.astype(cache.dtype)
    BH = B * H
    cache2 = cache.reshape(BH, S, D)
    cur2 = cur.reshape(BH, 1, D)

    # TODO(synk): PyTorch index_copy_ raises on an out-of-range index; TPU has no
    # runtime bounds check, so clamp to [0, S-1] (an OOB idx silently writes the
    # edge row instead of erroring).
    start = jnp.clip(jnp.asarray(start_idx, jnp.int32).reshape(-1)[0], 0, S - 1)
    start = jnp.reshape(start, (1,))

    out = pl.pallas_call(
        _decode_write_kernel,
        in_specs=[
            pl.BlockSpec(memory_space=pltpu.MemorySpace.SMEM),   # start row (scalar)
            pl.BlockSpec(memory_space=pltpu.MemorySpace.VMEM),   # cur (BH,1,D), whole
            pl.BlockSpec(memory_space=pl.ANY),                   # cache (aliased, unread)
        ],
        out_specs=pl.BlockSpec(memory_space=pl.ANY),
        out_shape=jax.ShapeDtypeStruct((BH, S, D), cache.dtype),
        input_output_aliases={2: 0},
        scratch_shapes=[pltpu.SemaphoreType.DMA(())],
        compiler_params=pltpu.CompilerParams(vmem_limit_bytes=_VMEM_LIMIT),
    )(start, cur2, cache2)
    return out.reshape(B, H, S, D)


# jit + buffer donation: the pallas input/output alias becomes a true in-place
# HBM update (no defensive full-cache copy) -- the single largest lever here.
_prefill_jit = jax.jit(kv_cache_write_prefill, donate_argnums=(0,))
_token_jit = jax.jit(kv_cache_write_token, donate_argnums=(0,))


# ---------------------------------------------------------------------------
# KVCache module (functional port)
# ---------------------------------------------------------------------------
class KVCache:
    """JAX / Pallas port of optimum-habana KVCache (functional cache updates).

    The update kernels are jitted with donate_argnums=(0,), so the previous
    cache buffer is reused in place; do not keep references to the old cache.
    """

    def __init__(self):
        self.cache = None
        self.inp_seq_len = -1

    def allocate(self, inp_seq_len, dtype, shape):
        if self.cache is None or self.cache.shape != shape:
            self.inp_seq_len = inp_seq_len
            self.cache = jnp.zeros(shape, dtype=dtype)
        else:
            assert self.inp_seq_len == inp_seq_len, (
                f"inp_seq_len must be the same. self.inp_seq_len:{self.inp_seq_len} "
                f"inp_seq_len:{inp_seq_len}"
            )
            self.cache = jnp.zeros_like(self.cache)

    @staticmethod
    def update(prev, cur, dim, idx, inp_seq_len):
        """Returns (new_prev, returned_value) — functional version of the in-place update."""
        orig_cur = cur
        if prev.shape == cur.shape:
            # prev.copy_(cur): the new cache IS cur (no kernel / no traffic needed).
            return cur.astype(prev.dtype), orig_cur
        if cur.shape[2] > 1 and cur.shape[2] <= prev.shape[2]:
            # prev[:, :, :inp_seq_len, :].copy_(cur)
            new_prev = _prefill_jit(prev, cur)
            return new_prev, orig_cur
        assert cur.shape[2] == 1, (
            f"Cannot update kv-cache. Unsupported shapes. prev:{prev.shape} cur:{cur.shape}"
        )
        if idx is not None:
            assert dim in (2, -2), "kernel path supports the seq dim (2) only"
            start = jnp.asarray(idx, jnp.int32).reshape(-1)[0] - 1
            new_prev = _token_jit(prev, cur, start)
            return new_prev, new_prev
        else:
            # TODO(synk): torch.cat growth path has a data-dependent output shape; plain jnp glue.
            return prev, jnp.concatenate((prev, cur), axis=dim)

    def get_shape(self):
        if self.cache is None:
            return None
        return self.cache.shape

    def __call__(self, cur, dim, idx):
        new_cache, ret = self.update(self.cache, cur, dim, idx, self.inp_seq_len)
        self.cache = new_cache
        return ret


if __name__ == "__main__":
    key = jax.random.PRNGKey(0)
    B, H, S, D = 2, 4, 16, 32
    inp_seq_len = 8

    kv = KVCache()
    kv.allocate(inp_seq_len, jnp.float32, (B, H, S, D))

    k1, k2, k3, k4 = jax.random.split(key, 4)

    # 1) prefill: cur has seq length inp_seq_len (< S) -> writes cache[:, :, :8, :]
    cur_prefill = jax.random.normal(k1, (B, H, inp_seq_len, D), dtype=jnp.float32)
    ret_prefill = kv(cur_prefill, 2, None)
    jax.block_until_ready(kv.cache)

    # 2) decode step: cur has seq length 1, idx points one past the write slot
    cur_tok = jax.random.normal(k2, (B, H, 1, D), dtype=jnp.float32)
    idx = jnp.array([inp_seq_len + 1], dtype=jnp.int32)  # writes at position idx-1 = 8
    ret_decode = kv(cur_tok, 2, idx)
    jax.block_until_ready(ret_decode)

    # reference check (numpy emulation of the PyTorch in-place semantics)
    ref = np.zeros((B, H, S, D), np.float32)
    ref[:, :, :inp_seq_len, :] = np.asarray(cur_prefill)
    ref[:, :, inp_seq_len:inp_seq_len + 1, :] = np.asarray(cur_tok)

    np.testing.assert_array_equal(np.asarray(ret_prefill), np.asarray(cur_prefill))
    np.testing.assert_array_equal(np.asarray(kv.cache), ref)
    np.testing.assert_array_equal(np.asarray(ret_decode), ref)

    # 3) sublane-unaligned prefill (exercises the bulk + tail split path)
    Lu = 10
    cache_u = jax.random.normal(k3, (B, H, S, D), dtype=jnp.float32)
    cur_u = jax.random.normal(k4, (B, H, Lu, D), dtype=jnp.float32)
    out_u = kv_cache_write_prefill(cache_u, cur_u)   # non-donating, eager call
    jax.block_until_ready(out_u)
    ref_u = np.asarray(cache_u).copy()
    ref_u[:, :, :Lu, :] = np.asarray(cur_u)
    np.testing.assert_array_equal(np.asarray(out_u), ref_u)

    print("KERNEL_OK")
</pallas_src>

<mosaic_0001>
module attributes {stable_mosaic.version = 11 : i64} {
  func.func @_overwrite_kernel(%arg0: i32, %arg1: i32, %arg2: memref<8x256xf32, #tpu.memory_space<vmem>>, %arg3: memref<8x512xf32, #tpu.memory_space<any>>, %arg4: memref<8x256xf32, #tpu.memory_space<vmem>>) attributes {dimension_semantics = [#tpu.dimension_semantics<parallel>, #tpu.dimension_semantics<parallel>], iteration_bounds = array<i64: 1, 1>, scalar_prefetch = 0 : i64, scratch_operands = 0 : i64, tpu.core_type = #tpu.core_type<tc>, window_params = [{transform_indices = @transform_0, window_bounds = array<i64: 8, 256>}, {}, {transform_indices = @transform_2, window_bounds = array<i64: 8, 256>}]} {
    %c0 = arith.constant 0 : index
    %c0_0 = arith.constant 0 : index
    %0 = vector.load %arg2[%c0, %c0_0] : memref<8x256xf32, #tpu.memory_space<vmem>>, vector<8x256xf32>
    %c0_1 = arith.constant 0 : index
    %c0_2 = arith.constant 0 : index
    %1 = vector.load %arg4[%c0_1, %c0_2] : memref<8x256xf32, #tpu.memory_space<vmem>>, vector<8x256xf32>
    tpu.vector_store %arg4[%c0_1, %c0_2], %0 {strides = array<i32>} : memref<8x256xf32, #tpu.memory_space<vmem>>, vector<8x256xf32>,
    return
  }
  func.func @transform_0(%arg0: i32, %arg1: i32) -> (i32, i32) {
    %c0_i32 = arith.constant 0 : i32
    return %arg0, %arg1 : i32, i32
  }
  func.func @transform_2(%arg0: i32, %arg1: i32) -> (i32, i32) {
    %c0_i32 = arith.constant 0 : i32
    return %arg0, %arg1 : i32, i32
  }
}

</mosaic_0001>

<llo_original>
// kernel: kv_cache_write_prefill.1
$region0: #{kv_cache_write_prefill.1}
  #allocation0 [shape = 'u32[]', space=smem, size = 0x4, offset = 0x4, fixed_abs, tag = 'smem constant byte address 0x4 - core index']
  #allocation1 [shape = 'u32[144,128]{1,0:T(1,128)}', space=vmem, size = 0x12000, scoped, tag = 'internal scratch']
  %s0 = inlined_call_operand.vmem [shape: f32[8,256], index: 0, kind: input, shape index: {}]
  %s1 = inlined_call_operand.vmem [shape: f32[8,512], index: 1, kind: input, shape index: {}, may-alias: {1,2}]
  %s2 = inlined_call_operand.vmem [shape: f32[8,512], index: 2, kind: output, shape index: {}, may-alias: {1,2}]
  %s3 = sld [smem:[#allocation0]]
  $region14: #{kv_cache_write_prefill.1} parent=0
    _
  %s5 = ssub.s32 1, %s3
  %s6 = scalar_select 0, %s5, %s3
  // Predicated region
  $region2: #{kv_cache_write_prefill.1} parent=0 // pred_check
    _
  $region3: #{kv_cache_write_prefill.1} parent=0 // pred_check_branch
    %8 = sbr.rel (0) target = $region5
  $region4: #{kv_cache_write_prefill.1} parent=0 // pred_region
    _
  $region5: #{kv_cache_write_prefill.1} parent=0 // pred_fallthru
    _
  %v9 = vld [vmem:[%s0] sm:$0xff]
  %v10 = vld [vmem:[%s0 + $0x8] sm:$0xff]
  %11 = vst [vmem:[%s2] sm:$0xff] %v9
  %12 = vst [vmem:[%s2 + $0x8] sm:$0xff] %v10
  // Predicated region
  $region6: #{kv_cache_write_prefill.1} parent=0 // pred_check
    _
  $region7: #{kv_cache_write_prefill.1} parent=0 // pred_check_branch
    %14 = sbr.rel (0) target = $region9
  $region8: #{kv_cache_write_prefill.1} parent=0 // pred_region
    _
  $region9: #{kv_cache_write_prefill.1} parent=0 // pred_fallthru
    _
  // Predicated region
  $region10: #{kv_cache_write_prefill.1} parent=0 // pred_check
    _
  $region11: #{kv_cache_write_prefill.1} parent=0 // pred_check_branch
    %16 = sbr.rel (0) target = $region13
  $region12: #{kv_cache_write_prefill.1} parent=0 // pred_region
    _
  $region13: #{kv_cache_write_prefill.1} parent=0 // pred_fallthru
    _

</llo_original>
